<compile_context>
chip_gen: v5e
topology: v5e:2x2
jax: 0.10.0
libtpu: 0.0.40
codegen_flags: <defaults>
</compile_context>

<pallas_src>
import jax
import jax.numpy as jnp
from jax.experimental import pallas as pl
from jax.experimental.pallas import tpu as pltpu

SUBLANE = 8


def _round_up(a: int, b: int) -> int:
    return ((a + b - 1) // b) * b


def _tensorcores_per_chip() -> int:
    """Best-effort TensorCores-per-chip query (v7x: 2, v5e/v6e: 1)."""
    try:
        dev = jax.devices()[0]
        n = getattr(dev, "num_cores", None)
        if isinstance(n, int) and n >= 1:
            return n
        kind = str(getattr(dev, "device_kind", "")).lower()
        if "v7" in kind:
            return 2
    except Exception:
        pass
    return 1


def mlp_kernel(x_ref, w1_ref, b1_ref, w2_ref, b2_ref, o_ref):
    # fc1 on the MXU with f32 accumulation; bias-add + ReLU on the VPU in f32.
    h = jnp.dot(x_ref[...].astype(w1_ref.dtype), w1_ref[...],
                preferred_element_type=jnp.float32)
    h = jnp.maximum(h + b1_ref[...], 0.0)              # [tm, H] + [1, H]
    # fc2 on the MXU with f32 accumulation; bias-add in f32.
    y = jnp.dot(h.astype(w2_ref.dtype), w2_ref[...],
                preferred_element_type=jnp.float32)
    o_ref[...] = (y + b2_ref[...]).astype(o_ref.dtype)  # [tm, O] + [1, O]


def prepare_mlp_params(w1, b1, w2, b2, param_dtype=jnp.float32):
    """One-time parameter prep (hoisted out of the per-call path).

    Weights are stored [in, out] (transposed vs. torch.nn.Linear's [out, in]).
    Biases are reshaped to [1, dim] and kept f32 regardless of param_dtype.
    """
    return (
        jnp.asarray(w1, param_dtype),
        jnp.asarray(b1, jnp.float32).reshape(1, -1),
        jnp.asarray(w2, param_dtype),
        jnp.asarray(b2, jnp.float32).reshape(1, -1),
    )


def mlp_forward(x, w1, b1, w2, b2, *, tm=2048):
    """y = relu(x @ w1 + b1) @ w2 + b2, with params from prepare_mlp_params."""
    N, D = x.shape
    H = w1.shape[1]
    O = w2.shape[1]

    # Row tiling.  Block dims equal to the full array dim are exempt from the
    # (8, 128) divisibility rule, so no padding of N / D / H / O is needed.
    if N <= tm:
        tm_eff = N                                  # single (possibly ragged) block
    else:
        tm_eff = _round_up(min(tm, N), SUBLANE)     # partial last block handles ragged N

    # Megacore (v7x, 2 TCs): keep >= 4 parallel steps (2 per core) when there
    # is enough work.  On 1-TC chips splitting only adds per-step overhead.
    if _tensorcores_per_chip() >= 2 and N >= 4 * SUBLANE:
        max_tile = _round_up(pl.cdiv(N, 4), SUBLANE)
        tm_eff = min(tm_eff, max_tile)

    grid = (pl.cdiv(N, tm_eff),)

    return pl.pallas_call(
        mlp_kernel,
        out_shape=jax.ShapeDtypeStruct((N, O), x.dtype),
        grid_spec=pltpu.PrefetchScalarGridSpec(
            num_scalar_prefetch=0,
            grid=grid,
            in_specs=[
                pl.BlockSpec((tm_eff, D), lambda i: (i, 0)),  # x row tile
                pl.BlockSpec((D, H), lambda i: (0, 0)),       # W1 (resident)
                pl.BlockSpec((1, H), lambda i: (0, 0)),       # b1
                pl.BlockSpec((H, O), lambda i: (0, 0)),       # W2 (resident)
                pl.BlockSpec((1, O), lambda i: (0, 0)),       # b2
            ],
            out_specs=pl.BlockSpec((tm_eff, O), lambda i: (i, 0)),
        ),
        compiler_params=pltpu.CompilerParams(
            dimension_semantics=("parallel",)),
    )(x, w1, b1, w2, b2)


def two_layer_perceptron(x, w1, b1, w2, b2, *, tm=2048, param_dtype=jnp.float32):
    """Convenience wrapper: per-call param prep + forward.

    For repeated calls with fixed weights, call prepare_mlp_params once and
    reuse mlp_forward (keeps the param reshape/cast off the hot path).
    param_dtype=jnp.bfloat16 is an opt-in MXU/bandwidth fast path (v6e/v7x);
    biases, ReLU and accumulation stay f32.
    """
    params = prepare_mlp_params(w1, b1, w2, b2, param_dtype)
    return mlp_forward(x, *params, tm=tm)


if __name__ == "__main__":
    # Module config (matches TwoLayerPerceptron defaults): input_dim=32,
    # hidden_dim=64, output dim 4. Small deterministic inputs.
    input_dim = 32
    hidden_dim = 64
    out_dim = 4
    batch = 8

    key = jax.random.PRNGKey(0)
    kx, kw1, kb1, kw2, kb2, kx2, kx3 = jax.random.split(key, 7)

    x = jax.random.normal(kx, (batch, input_dim), dtype=jnp.float32)
    # PyTorch nn.Linear init: U(-1/sqrt(fan_in), 1/sqrt(fan_in)); stored [in, out].
    lim1 = 1.0 / jnp.sqrt(input_dim)
    lim2 = 1.0 / jnp.sqrt(hidden_dim)
    w1 = jax.random.uniform(kw1, (input_dim, hidden_dim), jnp.float32, -lim1, lim1)
    b1 = jax.random.uniform(kb1, (hidden_dim,), jnp.float32, -lim1, lim1)
    w2 = jax.random.uniform(kw2, (hidden_dim, out_dim), jnp.float32, -lim2, lim2)
    b2 = jax.random.uniform(kb2, (out_dim,), jnp.float32, -lim2, lim2)

    def torch_ref(xx):
        return jnp.maximum(xx @ w1 + b1, 0.0) @ w2 + b2

    # --- f32 path (exact module semantics), tiny batch, single block ---
    out = jax.block_until_ready(two_layer_perceptron(x, w1, b1, w2, b2))
    assert out.shape == (batch, out_dim)
    assert jnp.allclose(out, torch_ref(x), atol=1e-5, rtol=1e-5)

    # --- f32 path, ragged larger batch (default big tile / v7x 4-way split) ---
    n_big = 1000
    x_big = jax.random.normal(kx2, (n_big, input_dim), dtype=jnp.float32)
    out_big = jax.block_until_ready(two_layer_perceptron(x_big, w1, b1, w2, b2))
    assert out_big.shape == (n_big, out_dim)
    assert jnp.allclose(out_big, torch_ref(x_big), atol=1e-4, rtol=1e-4)

    # --- f32 path, small tile forces a multi-step grid + partial last block ---
    out_big2 = jax.block_until_ready(
        two_layer_perceptron(x_big, w1, b1, w2, b2, tm=256))
    assert out_big2.shape == (n_big, out_dim)
    assert jnp.allclose(out_big2, torch_ref(x_big), atol=1e-4, rtol=1e-4)

    # --- f32 path, odd tiny batch (non-multiple-of-8 full-dim block) ---
    x_odd = jax.random.normal(kx3, (5, input_dim), dtype=jnp.float32)
    out_odd = jax.block_until_ready(two_layer_perceptron(x_odd, w1, b1, w2, b2))
    assert out_odd.shape == (5, out_dim)
    assert jnp.allclose(out_odd, torch_ref(x_odd), atol=1e-5, rtol=1e-5)

    # --- hoisted-params usage (prep once, call many times) ---
    params_f32 = prepare_mlp_params(w1, b1, w2, b2)
    out_a = jax.block_until_ready(mlp_forward(x, *params_f32))
    out_b = jax.block_until_ready(mlp_forward(x_big, *params_f32))
    assert jnp.allclose(out_a, torch_ref(x), atol=1e-5, rtol=1e-5)
    assert jnp.allclose(out_b, torch_ref(x_big), atol=1e-4, rtol=1e-4)

    # --- bf16 parameter path (opt-in v6e/v7x fast path), loose tolerance ---
    out_bf = jax.block_until_ready(
        two_layer_perceptron(x, w1, b1, w2, b2, param_dtype=jnp.bfloat16))
    bf = jnp.bfloat16
    xb = x.astype(bf).astype(jnp.float32)
    w1b = w1.astype(bf).astype(jnp.float32)
    w2b = w2.astype(bf).astype(jnp.float32)
    hb = jnp.maximum(xb @ w1b + b1, 0.0).astype(bf).astype(jnp.float32)
    ref_bf = hb @ w2b + b2
    assert out_bf.shape == (batch, out_dim)
    assert jnp.allclose(out_bf, ref_bf, atol=5e-3, rtol=5e-3)

    print("KERNEL_OK")
</pallas_src>

<mosaic_0001>
module attributes {stable_mosaic.version = 11 : i64} {
  func.func @mlp_kernel(%arg0: i32, %arg1: memref<8x32xf32, #tpu.memory_space<vmem>>, %arg2: memref<32x64xf32, #tpu.memory_space<vmem>>, %arg3: memref<1x64xf32, #tpu.memory_space<vmem>>, %arg4: memref<64x4xf32, #tpu.memory_space<vmem>>, %arg5: memref<1x4xf32, #tpu.memory_space<vmem>>, %arg6: memref<8x4xf32, #tpu.memory_space<vmem>>) attributes {dimension_semantics = [#tpu.dimension_semantics<parallel>], iteration_bounds = array<i64: 1>, scalar_prefetch = 0 : i64, scratch_operands = 0 : i64, tpu.core_type = #tpu.core_type<tc>, window_params = [{transform_indices = @transform_0, window_bounds = array<i64: 8, 32>}, {pipeline_mode = #tpu.pipeline_mode<synchronous>, transform_indices = @transform_1, window_bounds = array<i64: 32, 64>}, {pipeline_mode = #tpu.pipeline_mode<synchronous>, transform_indices = @transform_2, window_bounds = array<i64: 1, 64>}, {pipeline_mode = #tpu.pipeline_mode<synchronous>, transform_indices = @transform_3, window_bounds = array<i64: 64, 4>}, {pipeline_mode = #tpu.pipeline_mode<synchronous>, transform_indices = @transform_4, window_bounds = array<i64: 1, 4>}, {transform_indices = @transform_5, window_bounds = array<i64: 8, 4>}]} {
    %c0 = arith.constant 0 : index
    %c0_0 = arith.constant 0 : index
    %0 = vector.load %arg1[%c0, %c0_0] : memref<8x32xf32, #tpu.memory_space<vmem>>, vector<8x32xf32>
    %c0_1 = arith.constant 0 : index
    %c0_2 = arith.constant 0 : index
    %1 = vector.load %arg2[%c0_1, %c0_2] : memref<32x64xf32, #tpu.memory_space<vmem>>, vector<32x64xf32>
    %cst = arith.constant dense<0.000000e+00> : vector<8x64xf32>
    %2 = tpu.matmul %0, %1, %cst {dimension_numbers = #tpu.dot_dimension_numbers<[1], [0], [0], [1], [0, 0, 1, 1], [], []>} : vector<8x32xf32>, vector<32x64xf32>, vector<8x64xf32> -> vector<8x64xf32>
    %c0_3 = arith.constant 0 : index
    %c0_4 = arith.constant 0 : index
    %3 = vector.load %arg3[%c0_3, %c0_4] : memref<1x64xf32, #tpu.memory_space<vmem>>, vector<1x64xf32>
    %4 = vector.broadcast %3 : vector<1x64xf32> to vector<8x64xf32>
    %5 = arith.addf %2, %4 : vector<8x64xf32>
    %cst_5 = arith.constant 0.000000e+00 : f32
    %6 = vector.broadcast %cst_5 : f32 to vector<8x64xf32>
    %7 = arith.maximumf %5, %6 : vector<8x64xf32>
    %c0_6 = arith.constant 0 : index
    %c0_7 = arith.constant 0 : index
    %8 = vector.load %arg4[%c0_6, %c0_7] : memref<64x4xf32, #tpu.memory_space<vmem>>, vector<64x4xf32>
    %cst_8 = arith.constant dense<0.000000e+00> : vector<8x4xf32>
    %9 = tpu.matmul %7, %8, %cst_8 {dimension_numbers = #tpu.dot_dimension_numbers<[1], [0], [0], [1], [0, 0, 1, 1], [], []>} : vector<8x64xf32>, vector<64x4xf32>, vector<8x4xf32> -> vector<8x4xf32>
    %c0_9 = arith.constant 0 : index
    %c0_10 = arith.constant 0 : index
    %10 = vector.load %arg5[%c0_9, %c0_10] : memref<1x4xf32, #tpu.memory_space<vmem>>, vector<1x4xf32>
    %11 = vector.broadcast %10 : vector<1x4xf32> to vector<8x4xf32>
    %12 = arith.addf %9, %11 : vector<8x4xf32>
    %c0_11 = arith.constant 0 : index
    %c0_12 = arith.constant 0 : index
    %13 = vector.load %arg6[%c0_11, %c0_12] : memref<8x4xf32, #tpu.memory_space<vmem>>, vector<8x4xf32>
    tpu.vector_store %arg6[%c0_11, %c0_12], %12 {strides = array<i32>} : memref<8x4xf32, #tpu.memory_space<vmem>>, vector<8x4xf32>,
    return
  }
  func.func @transform_0(%arg0: i32) -> (i32, i32) {
    %c0_i32 = arith.constant 0 : i32
    %c0_i32_0 = arith.constant 0 : i32
    return %arg0, %c0_i32 : i32, i32
  }
  func.func @transform_1(%arg0: i32) -> (i32, i32) {
    %c0_i32 = arith.constant 0 : i32
    %c0_i32_0 = arith.constant 0 : i32
    %c0_i32_1 = arith.constant 0 : i32
    return %c0_i32, %c0_i32_0 : i32, i32
  }
  func.func @transform_2(%arg0: i32) -> (i32, i32) {
    %c0_i32 = arith.constant 0 : i32
    %c0_i32_0 = arith.constant 0 : i32
    %c0_i32_1 = arith.constant 0 : i32
    return %c0_i32, %c0_i32_0 : i32, i32
  }
  func.func @transform_3(%arg0: i32) -> (i32, i32) {
    %c0_i32 = arith.constant 0 : i32
    %c0_i32_0 = arith.constant 0 : i32
    %c0_i32_1 = arith.constant 0 : i32
    return %c0_i32, %c0_i32_0 : i32, i32
  }
  func.func @transform_4(%arg0: i32) -> (i32, i32) {
    %c0_i32 = arith.constant 0 : i32
    %c0_i32_0 = arith.constant 0 : i32
    %c0_i32_1 = arith.constant 0 : i32
    return %c0_i32, %c0_i32_0 : i32, i32
  }
  func.func @transform_5(%arg0: i32) -> (i32, i32) {
    %c0_i32 = arith.constant 0 : i32
    %c0_i32_0 = arith.constant 0 : i32
    return %arg0, %c0_i32 : i32, i32
  }
}

</mosaic_0001>

<llo_original>
// kernel: tpu_custom_call.1
$region0: #{tpu_custom_call.1}
  #allocation0 [shape = 'u32[]', space=smem, size = 0x4, offset = 0x4, fixed_abs, tag = 'smem constant byte address 0x4 - core index']
  #allocation1 [shape = 'u32[72,128]{1,0:T(1,128)}', space=vmem, size = 0x9000, scoped, tag = 'internal scratch']
  %s0 = inlined_call_operand.vmem [shape: f32[8,32], index: 0, kind: input, shape index: {}]
  %s1 = inlined_call_operand.vmem [shape: f32[32,64], index: 1, kind: input, shape index: {}]
  %s2 = inlined_call_operand.vmem [shape: f32[1,64], index: 2, kind: input, shape index: {}]
  %s3 = inlined_call_operand.vmem [shape: f32[64,4], index: 3, kind: input, shape index: {}]
  %s4 = inlined_call_operand.vmem [shape: f32[1,4], index: 4, kind: input, shape index: {}]
  %s5 = inlined_call_operand.vmem [shape: f32[8,4], index: 5, kind: output, shape index: {}]
  %s6 = sld [smem:[#allocation0]]
  $region30: #{tpu_custom_call.1} parent=0
    _
  %s8 = ssub.s32 1, %s6
  %s9 = scalar_select 0, %s8, %s6
  // Predicated region
  $region2: #{tpu_custom_call.1} parent=0 // pred_check
    _
  $region3: #{tpu_custom_call.1} parent=0 // pred_check_branch
    %11 = sbr.rel (0) target = $region5
  $region4: #{tpu_custom_call.1} parent=0 // pred_region
    _
  $region5: #{tpu_custom_call.1} parent=0 // pred_fallthru
    _
  // Predicated region
  $region6: #{tpu_custom_call.1} parent=0 // pred_check
    _
  $region7: #{tpu_custom_call.1} parent=0 // pred_check_branch
    %13 = sbr.rel (0) target = $region9
  $region8: #{tpu_custom_call.1} parent=0 // pred_region
    _
  $region9: #{tpu_custom_call.1} parent=0 // pred_fallthru
    _
  // Predicated region
  $region10: #{tpu_custom_call.1} parent=0 // pred_check
    _
  $region11: #{tpu_custom_call.1} parent=0 // pred_check_branch
    %15 = sbr.rel (0) target = $region13
  $region12: #{tpu_custom_call.1} parent=0 // pred_region
    _
  $region13: #{tpu_custom_call.1} parent=0 // pred_fallthru
    _
  // Predicated region
  $region14: #{tpu_custom_call.1} parent=0 // pred_check
    _
  $region15: #{tpu_custom_call.1} parent=0 // pred_check_branch
    %17 = sbr.rel (0) target = $region17
  $region16: #{tpu_custom_call.1} parent=0 // pred_region
    _
  $region17: #{tpu_custom_call.1} parent=0 // pred_fallthru
    _
  // Predicated region
  $region18: #{tpu_custom_call.1} parent=0 // pred_check
    _
  $region19: #{tpu_custom_call.1} parent=0 // pred_check_branch
    %19 = sbr.rel (0) target = $region21
  $region20: #{tpu_custom_call.1} parent=0 // pred_region
    _
  $region21: #{tpu_custom_call.1} parent=0 // pred_fallthru
    _
  %v20 = vld [vmem:[%s0] sm:$0xff]
  %v21 = vld [vmem:[%s1] sm:$0xff]
  %v22 = vld [vmem:[%s1 + $0x8] sm:$0xff]
  %v23 = vld [vmem:[%s1 + $0x10] sm:$0xff]
  %v24 = vld [vmem:[%s1 + $0x18] sm:$0xff]
  %v25 = vld [vmem:[%s2] sm:$0x1]
  %v27 = vperm.slane %v25, 0
  %vm29 = vcmask 261120
  %v31 = vsel %vm29, %v20, 0
  %33 = vmatpush.msra.mxu0 0.0
  %34 = vmatpush.msra.mxu0 0.0
  %35 = vmatpush.msra.mxu0 0.0
  %36 = vmatpush.msra.mxu0 0.0
  %37 = vmatpush.msra.mxu0 0.0
  %38 = vmatpush.msra.mxu0 0.0
  %39 = vmatpush.msra.mxu0 0.0
  %40 = vmatpush.msra.mxu0 0.0
  %41 = vmatpush.msra.mxu0 0.0
  %42 = vmatpush.msra.mxu0 0.0
  %43 = vmatpush.msra.mxu0 0.0
  %44 = vmatpush.msra.mxu0 0.0
  %45 = vmatpush.msra.mxu0 %v24
  %46 = vmatpush.msra.mxu0 %v23
  %47 = vmatpush.msra.mxu0 %v22
  %48 = vmatpush.msra.mxu0 %v21
  %49 = vmatmul.f32.gmra.mxu0 %v31
  %v50 = vpop.f32.mrf.mxu0
  %v51 = vadd.f32 %v27, %v50
  %52 = vdwg.mxu0
  %v53 = vmax.f32 %v51, 0.0
  %v54 = vld [vmem:[%s3] sm:$0xff]
  %v55 = vld [vmem:[%s3 + $0x8] sm:$0xff]
  %v56 = vld [vmem:[%s3 + $0x10] sm:$0xff]
  %v57 = vld [vmem:[%s3 + $0x18] sm:$0xff]
  %v58 = vld [vmem:[%s3 + $0x20] sm:$0xff]
  %v59 = vld [vmem:[%s3 + $0x28] sm:$0xff]
  %v60 = vld [vmem:[%s3 + $0x30] sm:$0xff]
  %v61 = vld [vmem:[%s3 + $0x38] sm:$0xff]
  %v62 = vld [vmem:[%s4] sm:$0x1]
  %v64 = vperm.slane %v62, 0
  %vm66 = vcmask 523264
  %v68 = vsel %vm66, %v53, 0
  %70 = vmatpush.msra.mxu0 0.0
  %71 = vmatpush.msra.mxu0 0.0
  %72 = vmatpush.msra.mxu0 0.0
  %73 = vmatpush.msra.mxu0 0.0
  %74 = vmatpush.msra.mxu0 0.0
  %75 = vmatpush.msra.mxu0 0.0
  %76 = vmatpush.msra.mxu0 0.0
  %77 = vmatpush.msra.mxu0 0.0
  %78 = vmatpush.msra.mxu0 %v61
  %79 = vmatpush.msra.mxu0 %v60
  %80 = vmatpush.msra.mxu0 %v59
  %81 = vmatpush.msra.mxu0 %v58
  %82 = vmatpush.msra.mxu0 %v57
  %83 = vmatpush.msra.mxu0 %v56
  %84 = vmatpush.msra.mxu0 %v55
  %85 = vmatpush.msra.mxu0 %v54
  %86 = vmatmul.f32.gmra.mxu0 %v68
  %v87 = vpop.f32.mrf.mxu0
  %v88 = vadd.f32 %v64, %v87
  %89 = vdwg.mxu0
  %vm90 = vcmask 31744
  %91 = vst.msk [vmem:[%s5] sm:$0xff] %vm90, %v88
  // Predicated region
  $region22: #{tpu_custom_call.1} parent=0 // pred_check
    _
  $region23: #{tpu_custom_call.1} parent=0 // pred_check_branch
    %93 = sbr.rel (0) target = $region25
  $region24: #{tpu_custom_call.1} parent=0 // pred_region
    _
  $region25: #{tpu_custom_call.1} parent=0 // pred_fallthru
    _
  // Predicated region
  $region26: #{tpu_custom_call.1} parent=0 // pred_check
    _
  $region27: #{tpu_custom_call.1} parent=0 // pred_check_branch
    %95 = sbr.rel (0) target = $region29
  $region28: #{tpu_custom_call.1} parent=0 // pred_region
    _
  $region29: #{tpu_custom_call.1} parent=0 // pred_fallthru
    _

</llo_original>
